<compile_context>
chip_gen: v6e
topology: v6e:2x2x1
jax: 0.10.0
libtpu: 0.0.40
codegen_flags: <defaults>
</compile_context>

<pallas_src>
import numpy as np
import jax
import jax.numpy as jnp
from jax.experimental import pallas as pl
from jax.experimental.pallas import tpu as pltpu


def _round_up(a: int, b: int) -> int:
    return (a + b - 1) // b * b


def _rope_kernel(pos_ref, invf_ref, x_ref, o_ref):
    """Interleaved RoPE on a lane-dense (token_tile, H*head_dim) tile.

    pos_ref : (T, 1) f32   per-token position within its sequence
    invf_ref: (1, C) f32   inverse frequencies, repeat-interleaved + tiled per head
    x_ref   : (T, C)       packed activations (C = num_heads * head_dim)
    o_ref   : (T, C)       rotated output
    """
    x = x_ref[...]                                        # (T, C), x.dtype
    theta = pos_ref[...] * invf_ref[...]                  # (T, C) f32 (one broadcasted mul)
    # Mirror the PyTorch module: the cos/sin cache is cast to x.dtype before use.
    cos = jnp.cos(theta).astype(x.dtype)
    sin = jnp.sin(theta).astype(x.dtype)

    c = x.shape[-1]
    # Interleaved "rotate_half": at even lane g the partner is -x[g+1],
    # at odd lane g it is +x[g-1].  head_dim is even, so lane parity == pair
    # parity for every head in the folded layout, and any roll wrap-around /
    # cross-head leakage lands only on lanes that the select discards.
    lane = jax.lax.broadcasted_iota(jnp.int32, x.shape, 1)
    is_even = (lane % 2) == 0
    x_next = pltpu.roll(x, c - 1, axis=1)                 # value of x[g+1] at lane g
    x_prev = pltpu.roll(x, 1, axis=1)                     # value of x[g-1] at lane g
    x_rot = jnp.where(is_even, -x_next, x_prev)

    o_ref[...] = x * cos + x_rot * sin


def rotary_positional_embeddings(x, cu_seq_lens, *, dim, base=10000.0,
                                 max_token_tile=1024,
                                 vmem_budget_bytes=32 * 1024 * 1024):
    """Apply interleaved rotary embeddings to packed tokens.

    x           : (total_tokens, num_heads, head_dim)
    cu_seq_lens : (num_seqs + 1,) int32 cumulative sequence lengths, starts at 0
    dim         : rotary dim (must equal head_dim here)
    """
    total, nheads, head_dim = x.shape
    # TODO(synk): partial rotary (dim < head_dim) and interleaved=False are not
    # implemented; the module's defaults (full-head, interleaved) are covered.
    assert dim == head_dim, "kernel assumes full-head rotary (dim == head_dim)"
    assert dim % 2 == 0

    c = nheads * head_dim
    itemsize = jnp.dtype(x.dtype).itemsize

    # ---- glue (plain JAX): parameter setup + index plumbing -----------------
    # inv_freq = 1 / base ** (arange(0, dim, 2) / dim), fp32 (pos_idx_in_fp32).
    inv_freq = 1.0 / (base ** (jnp.arange(0, dim, 2, dtype=jnp.float32) / dim))
    # Repeat-interleave to full head_dim ([f0,f0,f1,f1,...]) and tile over heads
    # so cos/sin are produced already interleaved at full lane width.
    invf_full = jnp.tile(jnp.repeat(inv_freq, 2), nheads)[None, :]      # (1, C)

    # Per-token position within its own sequence (varlen / cu_seqlens logic).
    tok = jnp.arange(total, dtype=jnp.int32)
    seq_id = jnp.searchsorted(cu_seq_lens[1:], tok, side="right")
    pos = (tok - cu_seq_lens[seq_id]).astype(jnp.float32)[:, None]      # (total, 1)

    # ---- tiling: lane-dense (tokens, C), VMEM-aware token tile ---------------
    # x-in + out, double-buffered  ->  ~4 * tile * C * itemsize bytes of VMEM.
    tile_cap = max(8, vmem_budget_bytes // (4 * c * itemsize))
    tt = min(int(tile_cap), int(max_token_tile), _round_up(total, 8))
    tt = max(8, (tt // 8) * 8)                    # sublane-aligned token tile
    padded = _round_up(total, tt)

    x2 = x.reshape(total, c)                      # metadata-only reshape (contiguous)
    if padded != total:                           # handle arbitrary varlen totals
        x2 = jnp.pad(x2, ((0, padded - total), (0, 0)))
        pos = jnp.pad(pos, ((0, padded - total), (0, 0)))

    grid = (padded // tt,)
    out = pl.pallas_call(
        _rope_kernel,
        out_shape=jax.ShapeDtypeStruct((padded, c), x.dtype),
        grid_spec=pltpu.PrefetchScalarGridSpec(
            num_scalar_prefetch=0,
            grid=grid,
            in_specs=[
                pl.BlockSpec((tt, 1), lambda i: (i, 0)),      # pos
                pl.BlockSpec((1, c), lambda i: (0, 0)),       # inv_freq (interleaved)
                pl.BlockSpec((tt, c), lambda i: (i, 0)),      # x (folded, lane-dense)
            ],
            out_specs=pl.BlockSpec((tt, c), lambda i: (i, 0)),
        ),
        compiler_params=pltpu.CompilerParams(
            dimension_semantics=("parallel",),                # megacore split on v7x
            vmem_limit_bytes=int(vmem_budget_bytes + (16 << 20)),
        ),
    )(pos, invf_full, x2)

    if padded != total:
        out = out[:total]
    return out.reshape(total, nheads, head_dim)


def _rope_reference(x, cu_seq_lens, dim, base=10000.0):
    """Pure-numpy reference matching flash-attn interleaved apply_rotary_emb."""
    x = np.asarray(x, dtype=np.float32)
    cu = np.asarray(cu_seq_lens)
    total, nheads, head_dim = x.shape
    inv_freq = 1.0 / (base ** (np.arange(0, dim, 2, dtype=np.float32) / dim))
    tok = np.arange(total)
    seq_id = np.searchsorted(cu[1:], tok, side="right")
    pos = (tok - cu[seq_id]).astype(np.float32)
    freqs = pos[:, None] * inv_freq[None, :]
    cos = np.cos(freqs)[:, None, :]
    sin = np.sin(freqs)[:, None, :]
    x1 = x[..., 0::2]
    x2 = x[..., 1::2]
    out = np.empty_like(x)
    out[..., 0::2] = x1 * cos - x2 * sin
    out[..., 1::2] = x1 * sin + x2 * cos
    return out


if __name__ == "__main__":
    key = jax.random.PRNGKey(0)
    # 2 packed sequences of unequal length (total 17 tokens -> exercises varlen
    # positions and the non-divisible-total padding path), 4 heads, head_dim 32.
    num_heads, head_dim = 4, 32
    seq_lens = [5, 12]
    total = sum(seq_lens)
    cu_seq_lens = jnp.array(np.concatenate([[0], np.cumsum(seq_lens)]),
                            dtype=jnp.int32)

    x = jax.random.normal(key, (total, num_heads, head_dim), dtype=jnp.float32)

    out = rotary_positional_embeddings(x, cu_seq_lens, dim=head_dim, base=10000.0)
    out = jax.block_until_ready(out)

    ref = _rope_reference(x, cu_seq_lens, dim=head_dim, base=10000.0)
    np.testing.assert_allclose(np.asarray(out), ref, atol=1e-5, rtol=1e-5)

    print("KERNEL_OK")
</pallas_src>

<mosaic_0001>
module attributes {stable_mosaic.version = 11 : i64} {
  func.func @_rope_kernel(%arg0: i32, %arg1: memref<24x1xf32, #tpu.memory_space<vmem>>, %arg2: memref<1x128xf32, #tpu.memory_space<vmem>>, %arg3: memref<24x128xf32, #tpu.memory_space<vmem>>, %arg4: memref<24x128xf32, #tpu.memory_space<vmem>>) attributes {dimension_semantics = [#tpu.dimension_semantics<parallel>], iteration_bounds = array<i64: 1>, scalar_prefetch = 0 : i64, scratch_operands = 0 : i64, tpu.core_type = #tpu.core_type<tc>, window_params = [{transform_indices = @transform_0, window_bounds = array<i64: 24, 1>}, {pipeline_mode = #tpu.pipeline_mode<synchronous>, transform_indices = @transform_1, window_bounds = array<i64: 1, 128>}, {transform_indices = @transform_2, window_bounds = array<i64: 24, 128>}, {transform_indices = @transform_3, window_bounds = array<i64: 24, 128>}]} {
    %c0 = arith.constant 0 : index
    %c0_0 = arith.constant 0 : index
    %0 = vector.load %arg3[%c0, %c0_0] : memref<24x128xf32, #tpu.memory_space<vmem>>, vector<24x128xf32>
    %c0_1 = arith.constant 0 : index
    %c0_2 = arith.constant 0 : index
    %1 = vector.load %arg1[%c0_1, %c0_2] : memref<24x1xf32, #tpu.memory_space<vmem>>, vector<24x1xf32>
    %c0_3 = arith.constant 0 : index
    %c0_4 = arith.constant 0 : index
    %2 = vector.load %arg2[%c0_3, %c0_4] : memref<1x128xf32, #tpu.memory_space<vmem>>, vector<1x128xf32>
    %3 = vector.broadcast %1 : vector<24x1xf32> to vector<24x128xf32>
    %4 = vector.broadcast %2 : vector<1x128xf32> to vector<24x128xf32>
    %5 = arith.mulf %3, %4 : vector<24x128xf32>
    %6 = math.cos %5 : vector<24x128xf32>
    %7 = math.sin %5 : vector<24x128xf32>
    %8 = tpu.iota {dimensions = array<i32: 1>} : vector<24x128xi32>
    %c2_i32 = arith.constant 2 : i32
    %c0_i32 = arith.constant 0 : i32
    %9 = arith.cmpi eq, %c2_i32, %c0_i32 : i32
    %c1_i32 = arith.constant 1 : i32
    %10 = arith.select %9, %c1_i32, %c2_i32 : i32
    %11 = vector.broadcast %10 : i32 to vector<24x128xi32>
    %12 = arith.remsi %8, %11 : vector<24x128xi32>
    %c0_i32_5 = arith.constant 0 : i32
    %13 = vector.broadcast %c0_i32_5 : i32 to vector<24x128xi32>
    %14 = arith.cmpi ne, %12, %13 : vector<24x128xi32>
    %c0_i32_6 = arith.constant 0 : i32
    %15 = vector.broadcast %c0_i32_6 : i32 to vector<24x128xi32>
    %16 = arith.cmpi slt, %12, %15 : vector<24x128xi32>
    %c0_i32_7 = arith.constant 0 : i32
    %17 = arith.cmpi slt, %10, %c0_i32_7 : i32
    %18 = vector.broadcast %17 : i1 to vector<24x128xi1>
    %19 = vector.broadcast %18 : vector<24x128xi1> to vector<24x128xi1>
    %20 = arith.xori %16, %19 : vector<24x128xi1>
    %21 = arith.andi %20, %14 : vector<24x128xi1>
    %22 = vector.broadcast %10 : i32 to vector<24x128xi32>
    %23 = arith.addi %12, %22 : vector<24x128xi32>
    %24 = arith.select %21, %23, %12 : vector<24x128xi1>, vector<24x128xi32>
    %c0_i32_8 = arith.constant 0 : i32
    %25 = vector.broadcast %c0_i32_8 : i32 to vector<24x128xi32>
    %26 = arith.cmpi eq, %24, %25 : vector<24x128xi32>
    %c127_i32 = arith.constant 127 : i32
    %27 = tpu.dynamic_rotate %0 by %c127_i32 dim 1 : vector<24x128xf32>, i32 -> vector<24x128xf32>
    %c1_i32_9 = arith.constant 1 : i32
    %28 = tpu.dynamic_rotate %0 by %c1_i32_9 dim 1 : vector<24x128xf32>, i32 -> vector<24x128xf32>
    %cst = arith.constant 0.000000e+00 : f32
    %29 = vector.broadcast %cst : f32 to vector<24x128xf32>
    %30 = arith.subf %29, %27 : vector<24x128xf32>
    %31 = arith.select %26, %30, %28 : vector<24x128xi1>, vector<24x128xf32>
    %32 = arith.mulf %0, %6 : vector<24x128xf32>
    %33 = arith.mulf %31, %7 : vector<24x128xf32>
    %34 = arith.addf %32, %33 : vector<24x128xf32>
    %c0_10 = arith.constant 0 : index
    %c0_11 = arith.constant 0 : index
    %35 = vector.load %arg4[%c0_10, %c0_11] : memref<24x128xf32, #tpu.memory_space<vmem>>, vector<24x128xf32>
    tpu.vector_store %arg4[%c0_10, %c0_11], %34 {strides = array<i32>} : memref<24x128xf32, #tpu.memory_space<vmem>>, vector<24x128xf32>,
    return
  }
  func.func @transform_0(%arg0: i32) -> (i32, i32) {
    %c0_i32 = arith.constant 0 : i32
    %c0_i32_0 = arith.constant 0 : i32
    return %arg0, %c0_i32 : i32, i32
  }
  func.func @transform_1(%arg0: i32) -> (i32, i32) {
    %c0_i32 = arith.constant 0 : i32
    %c0_i32_0 = arith.constant 0 : i32
    %c0_i32_1 = arith.constant 0 : i32
    return %c0_i32, %c0_i32_0 : i32, i32
  }
  func.func @transform_2(%arg0: i32) -> (i32, i32) {
    %c0_i32 = arith.constant 0 : i32
    %c0_i32_0 = arith.constant 0 : i32
    return %arg0, %c0_i32 : i32, i32
  }
  func.func @transform_3(%arg0: i32) -> (i32, i32) {
    %c0_i32 = arith.constant 0 : i32
    %c0_i32_0 = arith.constant 0 : i32
    return %arg0, %c0_i32 : i32, i32
  }
}

</mosaic_0001>

<llo_original>
// kernel: tpu_custom_call.1
$region0: #{tpu_custom_call.1}
  #allocation0 [shape = 'u32[]', space=smem, size = 0x4, offset = 0x4, fixed_abs, tag = 'smem constant byte address 0x4 - core index']
  #allocation1 [shape = 'u32[144,128]{1,0:T(1,128)}', space=vmem, size = 0x12000, scoped, tag = 'internal scratch']
  %s0 = inlined_call_operand.vmem [shape: f32[24,1], index: 0, kind: input, shape index: {}]
  %s1 = inlined_call_operand.vmem [shape: f32[1,128], index: 1, kind: input, shape index: {}]
  %s2 = inlined_call_operand.vmem [shape: f32[24,128], index: 2, kind: input, shape index: {}]
  %s3 = inlined_call_operand.hbm [shape: f32[24,128], index: 3, kind: output, shape index: {}]
  %s4 = sld [smem:[#allocation0]]
  $region22: #{tpu_custom_call.1} parent=0
    _
  %s6 = ssub.s32 1, %s4
  %s7 = scalar_select 0, %s6, %s4
  $region1: #{tpu_custom_call.1} parent=0
    #allocation2 [shape = 'u8[12288]{0}', space=vmem, size = 0x3000, scoped, tag = 'output window, operand 0, single buffered']
    #allocation3 [shape = 's32[1]{0}', space=sflag, size = 0x4, scoped, tag = 'scoped memory for tpu_custom_call.1']
    %8 = vsyncpa [#allocation3], 0
    // Predicated region
    $region2: #{tpu_custom_call.1} parent=1 // pred_check
      _
    $region3: #{tpu_custom_call.1} parent=1 // pred_check_branch
      %10 = sbr.rel (0) target = $region5
    $region4: #{tpu_custom_call.1} parent=1 // pred_region
      _
    $region5: #{tpu_custom_call.1} parent=1 // pred_fallthru
      _
    // Predicated region
    $region6: #{tpu_custom_call.1} parent=1 // pred_check
      _
    $region7: #{tpu_custom_call.1} parent=1 // pred_check_branch
      %12 = sbr.rel (0) target = $region9
    $region8: #{tpu_custom_call.1} parent=1 // pred_region
      _
    $region9: #{tpu_custom_call.1} parent=1 // pred_fallthru
      _
    // Predicated region
    $region10: #{tpu_custom_call.1} parent=1 // pred_check
      _
    $region11: #{tpu_custom_call.1} parent=1 // pred_check_branch
      %14 = sbr.rel (0) target = $region13
    $region12: #{tpu_custom_call.1} parent=1 // pred_region
      _
    $region13: #{tpu_custom_call.1} parent=1 // pred_fallthru
      _
    %v15 = vld [vmem:[%s2] sm:$0xff]
    %v16 = vld [vmem:[%s2 + $0x8] sm:$0xff]
    %v17 = vld [vmem:[%s2 + $0x10] sm:$0xff]
    %v18 = vld [vmem:[%s0] sm:$0xff]
    %v19 = vld [vmem:[%s0 + $0x8] sm:$0xff]
    %v20 = vld [vmem:[%s0 + $0x10] sm:$0xff]
    %v21 = vld [vmem:[%s1] sm:$0x1]
    %23 = vset.pattern.permute.xlu0 0
    %24 = vperm.xlu0 %23, %v18
    %v25 = vpop.permute.xlu0 %24
    %28 = vset.pattern.permute.xlu0 0
    %29 = vperm.xlu0 %28, %v19
    %v30 = vpop.permute.xlu0 %29
    %33 = vset.pattern.permute.xlu0 0
    %34 = vperm.xlu0 %33, %v20
    %v35 = vpop.permute.xlu0 %34
    %v38 = vlaneseq
    %v39 = vshrl.u32 %v38, 7
    %v40 = vsub.s32 0, %v39
    %v41 = vrot.slane %v21, %v40
    %v43 = vmul.f32 %v25, %v41
    %v44 = vmul.f32 %v30, %v41
    %v45 = vmul.f32 %v35, %v41
    %v46 = vand.u32 2147483647, %v43
    %vm47 = vcmp.le.f32.partialorder %v46, 0.7853982
    %vm48 = vcmp.lt.s32.totalorder %v43, 0
    %v49 = vand.u32 %v43, 2139095040
    %v50 = vshrl.u32 %v49, 23
    %v51 = vsub.s32 %v50, 127
    %v52 = vand.u32 2147483647, %v43
    %v53 = vand.u32 %v52, 8388607
    %v54 = vor.u32 %v53, 8388608
    %v55 = vsub.s32 0, %v54
    %v56 = vadd.s32 %v51, 1
    %vm57 = vcmp.gt.s32.totalorder %v56, 0
    %v58 = vsel %vm57, %v56, 0
    %v59 = vshrl.u32 %v58, 5
    %v60 = vand.u32 %v58, 31
    %v61 = vsub.s32 32, %v60
    %v62 = vshrl.u32 683565275, %v61
    %v63 = vshll.u32 683565275, %v60
    %v64 = vshrl.u32 2475754826, %v61
    %v65 = vor.u32 %v63, %v64
    %v66 = vshll.u32 2475754826, %v60
    %v67 = vshrl.u32 2131351028, %v61
    %v68 = vor.u32 %v66, %v67
    %v69 = vshll.u32 2131351028, %v60
    %v70 = vshrl.u32 2102212464, %v61
    %v71 = vor.u32 %v69, %v70
    %v72 = vshll.u32 2102212464, %v60
    %v73 = vshrl.u32 920167782, %v61
    %v74 = vor.u32 %v72, %v73
    %v75 = vshll.u32 920167782, %v60
    %v76 = vshrl.u32 1326507024, %v61
    %v77 = vor.u32 %v75, %v76
    %vm78 = vcmp.lt.s32.totalorder %v59, 1
    %vm79 = vcmp.lt.s32.totalorder %v59, 2
    %vm80 = vcmp.lt.s32.totalorder %v59, 3
    %vm81 = vcmp.lt.s32.totalorder %v59, 4
    %v82 = vsel %vm78, %v62, %v65
    %v83 = vsel %vm81, %v71, 2102212464
    %v84 = vsel %vm80, %v68, %v83
    %v85 = vsel %vm79, %v82, %v84
    %v86 = vsel %vm78, %v65, %v68
    %v87 = vsel %vm81, %v74, 920167782
    %v88 = vsel %vm80, %v71, %v87
    %v89 = vsel %vm79, %v86, %v88
    %v90 = vsel %vm78, %v68, %v71
    %v91 = vsel %vm81, %v77, 1326507024
    %v92 = vsel %vm80, %v74, %v91
    %v93 = vsel %vm79, %v90, %v92
    %v94 = vshll.u32 %v54, 8
    %v95 = vmul.u32.u64.compose %v94, %v93
    %v96 = vextract.low.u32 %v95
    %v97 = vextract.high.u32 %v95
    %v98 = vmul.u32.u64.compose %v94, %v89
    %v99 = vextract.low.u32 %v98
    %v100 = vextract.high.u32 %v98
    %v101 = vmul.u32 %v94, %v85
    %v102 = vadd.s32 %v97, %v99
    %vm103 = vc.u32 %v97, %v99
    %v104 = vadd.s32 %v100, 1
    %v105 = vsel %vm103, %v104, %v100
    %v106 = vadd.s32 %v101, %v105
    %v107 = vadd.s32 %v106, 536870912
    %v108 = vshrl.u32 %v107, 30
    %v109 = vshll.u32 %v108, 30
    %v110 = vsub.s32 %v106, %v109
    %vm111 = vcmp.lt.s32.totalorder %v110, 0
    %v112 = vsub.s32 0, %v110
    %v113 = vsel %vm111, %v112, %v110
    %v114 = vclz %v113
    %v115 = vsub.s32 %v114, 2
    %vm116 = vcmp.gt.s32.totalorder 0, %v115
    %v117 = vsel %vm116, 0, %v115
    %v118 = vsub.s32 32, %v117
    %v119 = vshll.u32 %v110, %v117
    %v120 = vshrl.u32 %v102, %v118
    %v121 = vor.u32 %v119, %v120
    %v122 = vsub.s32 4294967266, %v117
    %v123 = vadd.s32 %v122, 127
    %v124 = vshll.u32 %v123, 23
    %v125 = vor.u32 4788187, %v124
    %v126 = vand.u32 2147483647, %v125
    %v128 = vcvt.s32.f32 %v121
    %v129 = vmul.f32 %v128, %v126
    %v130 = vxor.u32 %v129, 2147483648
    %v131 = vsel %vm48, %v130, %v129
    %v132 = vsub.s32 4, %v108
    %v133 = vsel %vm48, %v132, %v108
    %v134 = vsel %vm47, %v43, %v131
    %v135 = vsel %vm47, 0, %v133
    %v136 = vcosq.f32.pop %v134
    %v137 = vsinq.f32.pop %v134
    %vm138 = vweird.f32 %v43
    %v139 = vand.u32 %v135, 3
    %vm140 = vcmp.lt.s32.totalorder %v139, 2
    %vm141 = vcmp.eq.s32.totalorder %v139, 0
    %v142 = vxor.u32 %v137, 2147483648
    %v143 = vsel %vm141, %v136, %v142
    %vm144 = vcmp.eq.s32.totalorder %v139, 2
    %v145 = vxor.u32 %v136, 2147483648
    %v146 = vsel %vm144, %v145, %v137
    %v147 = vsel %vm140, %v143, %v146
    %v148 = vsel %vm138, nan, %v147
    %v149 = vand.u32 2147483647, %v44
    %vm150 = vcmp.le.f32.partialorder %v149, 0.7853982
    %vm151 = vcmp.lt.s32.totalorder %v44, 0
    %v152 = vand.u32 %v44, 2139095040
    %v153 = vshrl.u32 %v152, 23
    %v154 = vsub.s32 %v153, 127
    %v155 = vand.u32 2147483647, %v44
    %v156 = vand.u32 %v155, 8388607
    %v157 = vor.u32 %v156, 8388608
    %v158 = vsub.s32 0, %v157
    %v159 = vadd.s32 %v154, 1
    %vm160 = vcmp.gt.s32.totalorder %v159, 0
    %v161 = vsel %vm160, %v159, 0
    %v162 = vshrl.u32 %v161, 5
    %v163 = vand.u32 %v161, 31
    %v164 = vsub.s32 32, %v163
    %v165 = vshrl.u32 683565275, %v164
    %v166 = vshll.u32 683565275, %v163
    %v167 = vshrl.u32 2475754826, %v164
    %v168 = vor.u32 %v166, %v167
    %v169 = vshll.u32 2475754826, %v163
    %v170 = vshrl.u32 2131351028, %v164
    %v171 = vor.u32 %v169, %v170
    %v172 = vshll.u32 2131351028, %v163
    %v173 = vshrl.u32 2102212464, %v164
    %v174 = vor.u32 %v172, %v173
    %v175 = vshll.u32 2102212464, %v163
    %v176 = vshrl.u32 920167782, %v164
    %v177 = vor.u32 %v175, %v176
    %v178 = vshll.u32 920167782, %v163
    %v179 = vshrl.u32 1326507024, %v164
    %v180 = vor.u32 %v178, %v179
    %vm181 = vcmp.lt.s32.totalorder %v162, 1
    %vm182 = vcmp.lt.s32.totalorder %v162, 2
    %vm183 = vcmp.lt.s32.totalorder %v162, 3
    %vm184 = vcmp.lt.s32.totalorder %v162, 4
    %v185 = vsel %vm181, %v165, %v168
    %v186 = vsel %vm184, %v174, 2102212464
    %v187 = vsel %vm183, %v171, %v186
    %v188 = vsel %vm182, %v185, %v187
    %v189 = vsel %vm181, %v168, %v171
    %v190 = vsel %vm184, %v177, 920167782
    %v191 = vsel %vm183, %v174, %v190
    %v192 = vsel %vm182, %v189, %v191
    %v193 = vsel %vm181, %v171, %v174
    %v194 = vsel %vm184, %v180, 1326507024
    %v195 = vsel %vm183, %v177, %v194
    %v196 = vsel %vm182, %v193, %v195
    %v197 = vshll.u32 %v157, 8
    %v198 = vmul.u32.u64.compose %v197, %v196
    %v199 = vextract.low.u32 %v198
    %v200 = vextract.high.u32 %v198
    %v201 = vmul.u32.u64.compose %v197, %v192
    %v202 = vextract.low.u32 %v201
    %v203 = vextract.high.u32 %v201
    %v204 = vmul.u32 %v197, %v188
    %v205 = vadd.s32 %v200, %v202
    %vm206 = vc.u32 %v200, %v202
    %v207 = vadd.s32 %v203, 1
    %v208 = vsel %vm206, %v207, %v203
    %v209 = vadd.s32 %v204, %v208
    %v210 = vadd.s32 %v209, 536870912
    %v211 = vshrl.u32 %v210, 30
    %v212 = vshll.u32 %v211, 30
    %v213 = vsub.s32 %v209, %v212
    %vm214 = vcmp.lt.s32.totalorder %v213, 0
    %v215 = vsub.s32 0, %v213
    %v216 = vsel %vm214, %v215, %v213
    %v217 = vclz %v216
    %v218 = vsub.s32 %v217, 2
    %vm219 = vcmp.gt.s32.totalorder 0, %v218
    %v220 = vsel %vm219, 0, %v218
    %v221 = vsub.s32 32, %v220
    %v222 = vshll.u32 %v213, %v220
    %v223 = vshrl.u32 %v205, %v221
    %v224 = vor.u32 %v222, %v223
    %v225 = vsub.s32 4294967266, %v220
    %v226 = vadd.s32 %v225, 127
    %v227 = vshll.u32 %v226, 23
    %v228 = vor.u32 4788187, %v227
    %v229 = vand.u32 2147483647, %v228
    %v231 = vcvt.s32.f32 %v224
    %v232 = vmul.f32 %v231, %v229
    %v233 = vxor.u32 %v232, 2147483648
    %v234 = vsel %vm151, %v233, %v232
    %v235 = vsub.s32 4, %v211
    %v236 = vsel %vm151, %v235, %v211
    %v237 = vsel %vm150, %v44, %v234
    %v238 = vsel %vm150, 0, %v236
    %v239 = vcosq.f32.pop %v237
    %v240 = vsinq.f32.pop %v237
    %vm241 = vweird.f32 %v44
    %v242 = vand.u32 %v238, 3
    %vm243 = vcmp.lt.s32.totalorder %v242, 2
    %vm244 = vcmp.eq.s32.totalorder %v242, 0
    %v245 = vxor.u32 %v240, 2147483648
    %v246 = vsel %vm244, %v239, %v245
    %vm247 = vcmp.eq.s32.totalorder %v242, 2
    %v248 = vxor.u32 %v239, 2147483648
    %v249 = vsel %vm247, %v248, %v240
    %v250 = vsel %vm243, %v246, %v249
    %v251 = vsel %vm241, nan, %v250
    %v252 = vand.u32 2147483647, %v45
    %vm253 = vcmp.le.f32.partialorder %v252, 0.7853982
    %vm254 = vcmp.lt.s32.totalorder %v45, 0
    %v255 = vand.u32 %v45, 2139095040
    %v256 = vshrl.u32 %v255, 23
    %v257 = vsub.s32 %v256, 127
    %v258 = vand.u32 2147483647, %v45
    %v259 = vand.u32 %v258, 8388607
    %v260 = vor.u32 %v259, 8388608
    %v261 = vsub.s32 0, %v260
    %v262 = vadd.s32 %v257, 1
    %vm263 = vcmp.gt.s32.totalorder %v262, 0
    %v264 = vsel %vm263, %v262, 0
    %v265 = vshrl.u32 %v264, 5
    %v266 = vand.u32 %v264, 31
    %v267 = vsub.s32 32, %v266
    %v268 = vshrl.u32 683565275, %v267
    %v269 = vshll.u32 683565275, %v266
    %v270 = vshrl.u32 2475754826, %v267
    %v271 = vor.u32 %v269, %v270
    %v272 = vshll.u32 2475754826, %v266
    %v273 = vshrl.u32 2131351028, %v267
    %v274 = vor.u32 %v272, %v273
    %v275 = vshll.u32 2131351028, %v266
    %v276 = vshrl.u32 2102212464, %v267
    %v277 = vor.u32 %v275, %v276
    %v278 = vshll.u32 2102212464, %v266
    %v279 = vshrl.u32 920167782, %v267
    %v280 = vor.u32 %v278, %v279
    %v281 = vshll.u32 920167782, %v266
    %v282 = vshrl.u32 1326507024, %v267
    %v283 = vor.u32 %v281, %v282
    %vm284 = vcmp.lt.s32.totalorder %v265, 1
    %vm285 = vcmp.lt.s32.totalorder %v265, 2
    %vm286 = vcmp.lt.s32.totalorder %v265, 3
    %vm287 = vcmp.lt.s32.totalorder %v265, 4
    %v288 = vsel %vm284, %v268, %v271
    %v289 = vsel %vm287, %v277, 2102212464
    %v290 = vsel %vm286, %v274, %v289
    %v291 = vsel %vm285, %v288, %v290
    %v292 = vsel %vm284, %v271, %v274
    %v293 = vsel %vm287, %v280, 920167782
    %v294 = vsel %vm286, %v277, %v293
    %v295 = vsel %vm285, %v292, %v294
    %v296 = vsel %vm284, %v274, %v277
    %v297 = vsel %vm287, %v283, 1326507024
    %v298 = vsel %vm286, %v280, %v297
    %v299 = vsel %vm285, %v296, %v298
    %v300 = vshll.u32 %v260, 8
    %v301 = vmul.u32.u64.compose %v300, %v299
    %v302 = vextract.low.u32 %v301
    %v303 = vextract.high.u32 %v301
    %v304 = vmul.u32.u64.compose %v300, %v295
    %v305 = vextract.low.u32 %v304
    %v306 = vextract.high.u32 %v304
    %v307 = vmul.u32 %v300, %v291
    %v308 = vadd.s32 %v303, %v305
    %vm309 = vc.u32 %v303, %v305
    %v310 = vadd.s32 %v306, 1
    %v311 = vsel %vm309, %v310, %v306
    %v312 = vadd.s32 %v307, %v311
    %v313 = vadd.s32 %v312, 536870912
    %v314 = vshrl.u32 %v313, 30
    %v315 = vshll.u32 %v314, 30
    %v316 = vsub.s32 %v312, %v315
    %vm317 = vcmp.lt.s32.totalorder %v316, 0
    %v318 = vsub.s32 0, %v316
    %v319 = vsel %vm317, %v318, %v316
    %v320 = vclz %v319
    %v321 = vsub.s32 %v320, 2
    %vm322 = vcmp.gt.s32.totalorder 0, %v321
    %v323 = vsel %vm322, 0, %v321
    %v324 = vsub.s32 32, %v323
    %v325 = vshll.u32 %v316, %v323
    %v326 = vshrl.u32 %v308, %v324
    %v327 = vor.u32 %v325, %v326
    %v328 = vsub.s32 4294967266, %v323
    %v329 = vadd.s32 %v328, 127
    %v330 = vshll.u32 %v329, 23
    %v331 = vor.u32 4788187, %v330
    %v332 = vand.u32 2147483647, %v331
    %v334 = vcvt.s32.f32 %v327
    %v335 = vmul.f32 %v334, %v332
    %v336 = vxor.u32 %v335, 2147483648
    %v337 = vsel %vm254, %v336, %v335
    %v338 = vsub.s32 4, %v314
    %v339 = vsel %vm254, %v338, %v314
    %v340 = vsel %vm253, %v45, %v337
    %v341 = vsel %vm253, 0, %v339
    %v342 = vcosq.f32.pop %v340
    %v343 = vsinq.f32.pop %v340
    %vm344 = vweird.f32 %v45
    %v345 = vand.u32 %v341, 3
    %vm346 = vcmp.lt.s32.totalorder %v345, 2
    %vm347 = vcmp.eq.s32.totalorder %v345, 0
    %v348 = vxor.u32 %v343, 2147483648
    %v349 = vsel %vm347, %v342, %v348
    %vm350 = vcmp.eq.s32.totalorder %v345, 2
    %v351 = vxor.u32 %v342, 2147483648
    %v352 = vsel %vm350, %v351, %v343
    %v353 = vsel %vm346, %v349, %v352
    %v354 = vsel %vm344, nan, %v353
    %v355 = vand.u32 2147483647, %v43
    %vm356 = vcmp.le.f32.partialorder %v355, 0.7853982
    %vm357 = vcmp.lt.s32.totalorder %v43, 0
    %v358 = vand.u32 %v43, 2139095040
    %v359 = vshrl.u32 %v358, 23
    %v360 = vsub.s32 %v359, 127
    %v361 = vand.u32 2147483647, %v43
    %v362 = vand.u32 %v361, 8388607
    %v363 = vor.u32 %v362, 8388608
    %v364 = vsub.s32 0, %v363
    %v365 = vadd.s32 %v360, 1
    %vm366 = vcmp.gt.s32.totalorder %v365, 0
    %v367 = vsel %vm366, %v365, 0
    %v368 = vshrl.u32 %v367, 5
    %v369 = vand.u32 %v367, 31
    %v370 = vsub.s32 32, %v369
    %v371 = vshrl.u32 683565275, %v370
    %v372 = vshll.u32 683565275, %v369
    %v373 = vshrl.u32 2475754826, %v370
    %v374 = vor.u32 %v372, %v373
    %v375 = vshll.u32 2475754826, %v369
    %v376 = vshrl.u32 2131351028, %v370
    %v377 = vor.u32 %v375, %v376
    %v378 = vshll.u32 2131351028, %v369
    %v379 = vshrl.u32 2102212464, %v370
    %v380 = vor.u32 %v378, %v379
    %v381 = vshll.u32 2102212464, %v369
    %v382 = vshrl.u32 920167782, %v370
    %v383 = vor.u32 %v381, %v382
    %v384 = vshll.u32 920167782, %v369
    %v385 = vshrl.u32 1326507024, %v370
    %v386 = vor.u32 %v384, %v385
    %vm387 = vcmp.lt.s32.totalorder %v368, 1
    %vm388 = vcmp.lt.s32.totalorder %v368, 2
    %vm389 = vcmp.lt.s32.totalorder %v368, 3
    %vm390 = vcmp.lt.s32.totalorder %v368, 4
    %v391 = vsel %vm387, %v371, %v374
    %v392 = vsel %vm390, %v380, 2102212464
    %v393 = vsel %vm389, %v377, %v392
    %v394 = vsel %vm388, %v391, %v393
    %v395 = vsel %vm387, %v374, %v377
    %v396 = vsel %vm390, %v383, 920167782
    %v397 = vsel %vm389, %v380, %v396
    %v398 = vsel %vm388, %v395, %v397
    %v399 = vsel %vm387, %v377, %v380
    %v400 = vsel %vm390, %v386, 1326507024
    %v401 = vsel %vm389, %v383, %v400
    %v402 = vsel %vm388, %v399, %v401
    %v403 = vshll.u32 %v363, 8
    %v404 = vmul.u32.u64.compose %v403, %v402
    %v405 = vextract.low.u32 %v404
    %v406 = vextract.high.u32 %v404
    %v407 = vmul.u32.u64.compose %v403, %v398
    %v408 = vextract.low.u32 %v407
    %v409 = vextract.high.u32 %v407
    %v410 = vmul.u32 %v403, %v394
    %v411 = vadd.s32 %v406, %v408
    %vm412 = vc.u32 %v406, %v408
    %v413 = vadd.s32 %v409, 1
    %v414 = vsel %vm412, %v413, %v409
    %v415 = vadd.s32 %v410, %v414
    %v416 = vadd.s32 %v415, 536870912
    %v417 = vshrl.u32 %v416, 30
    %v418 = vshll.u32 %v417, 30
    %v419 = vsub.s32 %v415, %v418
    %vm420 = vcmp.lt.s32.totalorder %v419, 0
    %v421 = vsub.s32 0, %v419
    %v422 = vsel %vm420, %v421, %v419
    %v423 = vclz %v422
    %v424 = vsub.s32 %v423, 2
    %vm425 = vcmp.gt.s32.totalorder 0, %v424
    %v426 = vsel %vm425, 0, %v424
    %v427 = vsub.s32 32, %v426
    %v428 = vshll.u32 %v419, %v426
    %v429 = vshrl.u32 %v411, %v427
    %v430 = vor.u32 %v428, %v429
    %v431 = vsub.s32 4294967266, %v426
    %v432 = vadd.s32 %v431, 127
    %v433 = vshll.u32 %v432, 23
    %v434 = vor.u32 4788187, %v433
    %v435 = vand.u32 2147483647, %v434
    %v437 = vcvt.s32.f32 %v430
    %v438 = vmul.f32 %v437, %v435
    %v439 = vxor.u32 %v438, 2147483648
    %v440 = vsel %vm357, %v439, %v438
    %v441 = vsub.s32 4, %v417
    %v442 = vsel %vm357, %v441, %v417
    %v443 = vsel %vm356, %v43, %v440
    %v444 = vsel %vm356, 0, %v442
    %v445 = vcosq.f32.pop %v443
    %v446 = vsinq.f32.pop %v443
    %vm447 = vweird.f32 %v43
    %v448 = vadd.s32 %v444, 3
    %v449 = vand.u32 %v448, 3
    %vm450 = vcmp.lt.s32.totalorder %v449, 2
    %vm451 = vcmp.eq.s32.totalorder %v449, 0
    %v452 = vxor.u32 %v446, 2147483648
    %v453 = vsel %vm451, %v445, %v452
    %vm454 = vcmp.eq.s32.totalorder %v449, 2
    %v455 = vxor.u32 %v445, 2147483648
    %v456 = vsel %vm454, %v455, %v446
    %v457 = vsel %vm450, %v453, %v456
    %v458 = vsel %vm447, nan, %v457
    %v459 = vand.u32 2147483647, %v44
    %vm460 = vcmp.le.f32.partialorder %v459, 0.7853982
    %vm461 = vcmp.lt.s32.totalorder %v44, 0
    %v462 = vand.u32 %v44, 2139095040
    %v463 = vshrl.u32 %v462, 23
    %v464 = vsub.s32 %v463, 127
    %v465 = vand.u32 2147483647, %v44
    %v466 = vand.u32 %v465, 8388607
    %v467 = vor.u32 %v466, 8388608
    %v468 = vsub.s32 0, %v467
    %v469 = vadd.s32 %v464, 1
    %vm470 = vcmp.gt.s32.totalorder %v469, 0
    %v471 = vsel %vm470, %v469, 0
    %v472 = vshrl.u32 %v471, 5
    %v473 = vand.u32 %v471, 31
    %v474 = vsub.s32 32, %v473
    %v475 = vshrl.u32 683565275, %v474
    %v476 = vshll.u32 683565275, %v473
    %v477 = vshrl.u32 2475754826, %v474
    %v478 = vor.u32 %v476, %v477
    %v479 = vshll.u32 2475754826, %v473
    %v480 = vshrl.u32 2131351028, %v474
    %v481 = vor.u32 %v479, %v480
    %v482 = vshll.u32 2131351028, %v473
    %v483 = vshrl.u32 2102212464, %v474
    %v484 = vor.u32 %v482, %v483
    %v485 = vshll.u32 2102212464, %v473
    %v486 = vshrl.u32 920167782, %v474
    %v487 = vor.u32 %v485, %v486
    %v488 = vshll.u32 920167782, %v473
    %v489 = vshrl.u32 1326507024, %v474
    %v490 = vor.u32 %v488, %v489
    %vm491 = vcmp.lt.s32.totalorder %v472, 1
    %vm492 = vcmp.lt.s32.totalorder %v472, 2
    %vm493 = vcmp.lt.s32.totalorder %v472, 3
    %vm494 = vcmp.lt.s32.totalorder %v472, 4
    %v495 = vsel %vm491, %v475, %v478
    %v496 = vsel %vm494, %v484, 2102212464
    %v497 = vsel %vm493, %v481, %v496
    %v498 = vsel %vm492, %v495, %v497
    %v499 = vsel %vm491, %v478, %v481
    %v500 = vsel %vm494, %v487, 920167782
    %v501 = vsel %vm493, %v484, %v500
    %v502 = vsel %vm492, %v499, %v501
    %v503 = vsel %vm491, %v481, %v484
    %v504 = vsel %vm494, %v490, 1326507024
    %v505 = vsel %vm493, %v487, %v504
    %v506 = vsel %vm492, %v503, %v505
    %v507 = vshll.u32 %v467, 8
    %v508 = vmul.u32.u64.compose %v507, %v506
    %v509 = vextract.low.u32 %v508
    %v510 = vextract.high.u32 %v508
    %v511 = vmul.u32.u64.compose %v507, %v502
    %v512 = vextract.low.u32 %v511
    %v513 = vextract.high.u32 %v511
    %v514 = vmul.u32 %v507, %v498
    %v515 = vadd.s32 %v510, %v512
    %vm516 = vc.u32 %v510, %v512
    %v517 = vadd.s32 %v513, 1
    %v518 = vsel %vm516, %v517, %v513
    %v519 = vadd.s32 %v514, %v518
    %v520 = vadd.s32 %v519, 536870912
    %v521 = vshrl.u32 %v520, 30
    %v522 = vshll.u32 %v521, 30
    %v523 = vsub.s32 %v519, %v522
    %vm524 = vcmp.lt.s32.totalorder %v523, 0
    %v525 = vsub.s32 0, %v523
    %v526 = vsel %vm524, %v525, %v523
    %v527 = vclz %v526
    %v528 = vsub.s32 %v527, 2
    %vm529 = vcmp.gt.s32.totalorder 0, %v528
    %v530 = vsel %vm529, 0, %v528
    %v531 = vsub.s32 32, %v530
    %v532 = vshll.u32 %v523, %v530
    %v533 = vshrl.u32 %v515, %v531
    %v534 = vor.u32 %v532, %v533
    %v535 = vsub.s32 4294967266, %v530
    %v536 = vadd.s32 %v535, 127
    %v537 = vshll.u32 %v536, 23
    %v538 = vor.u32 4788187, %v537
    %v539 = vand.u32 2147483647, %v538
    %v541 = vcvt.s32.f32 %v534
    %v542 = vmul.f32 %v541, %v539
    %v543 = vxor.u32 %v542, 2147483648
    %v544 = vsel %vm461, %v543, %v542
    %v545 = vsub.s32 4, %v521
    %v546 = vsel %vm461, %v545, %v521
    %v547 = vsel %vm460, %v44, %v544
    %v548 = vsel %vm460, 0, %v546
    %v549 = vcosq.f32.pop %v547
    %v550 = vsinq.f32.pop %v547
    %vm551 = vweird.f32 %v44
    %v552 = vadd.s32 %v548, 3
    %v553 = vand.u32 %v552, 3
    %vm554 = vcmp.lt.s32.totalorder %v553, 2
    %vm555 = vcmp.eq.s32.totalorder %v553, 0
    %v556 = vxor.u32 %v550, 2147483648
    %v557 = vsel %vm555, %v549, %v556
    %vm558 = vcmp.eq.s32.totalorder %v553, 2
    %v559 = vxor.u32 %v549, 2147483648
    %v560 = vsel %vm558, %v559, %v550
    %v561 = vsel %vm554, %v557, %v560
    %v562 = vsel %vm551, nan, %v561
    %v563 = vand.u32 2147483647, %v45
    %vm564 = vcmp.le.f32.partialorder %v563, 0.7853982
    %vm565 = vcmp.lt.s32.totalorder %v45, 0
    %v566 = vand.u32 %v45, 2139095040
    %v567 = vshrl.u32 %v566, 23
    %v568 = vsub.s32 %v567, 127
    %v569 = vand.u32 2147483647, %v45
    %v570 = vand.u32 %v569, 8388607
    %v571 = vor.u32 %v570, 8388608
    %v572 = vsub.s32 0, %v571
    %v573 = vadd.s32 %v568, 1
    %vm574 = vcmp.gt.s32.totalorder %v573, 0
    %v575 = vsel %vm574, %v573, 0
    %v576 = vshrl.u32 %v575, 5
    %v577 = vand.u32 %v575, 31
    %v578 = vsub.s32 32, %v577
    %v579 = vshrl.u32 683565275, %v578
    %v580 = vshll.u32 683565275, %v577
    %v581 = vshrl.u32 2475754826, %v578
    %v582 = vor.u32 %v580, %v581
    %v583 = vshll.u32 2475754826, %v577
    %v584 = vshrl.u32 2131351028, %v578
    %v585 = vor.u32 %v583, %v584
    %v586 = vshll.u32 2131351028, %v577
    %v587 = vshrl.u32 2102212464, %v578
    %v588 = vor.u32 %v586, %v587
    %v589 = vshll.u32 2102212464, %v577
    %v590 = vshrl.u32 920167782, %v578
    %v591 = vor.u32 %v589, %v590
    %v592 = vshll.u32 920167782, %v577
    %v593 = vshrl.u32 1326507024, %v578
    %v594 = vor.u32 %v592, %v593
    %vm595 = vcmp.lt.s32.totalorder %v576, 1
    %vm596 = vcmp.lt.s32.totalorder %v576, 2
    %vm597 = vcmp.lt.s32.totalorder %v576, 3
    %vm598 = vcmp.lt.s32.totalorder %v576, 4
    %v599 = vsel %vm595, %v579, %v582
    %v600 = vsel %vm598, %v588, 2102212464
    %v601 = vsel %vm597, %v585, %v600
    %v602 = vsel %vm596, %v599, %v601
    %v603 = vsel %vm595, %v582, %v585
    %v604 = vsel %vm598, %v591, 920167782
    %v605 = vsel %vm597, %v588, %v604
    %v606 = vsel %vm596, %v603, %v605
    %v607 = vsel %vm595, %v585, %v588
    %v608 = vsel %vm598, %v594, 1326507024
    %v609 = vsel %vm597, %v591, %v608
    %v610 = vsel %vm596, %v607, %v609
    %v611 = vshll.u32 %v571, 8
    %v612 = vmul.u32.u64.compose %v611, %v610
    %v613 = vextract.low.u32 %v612
    %v614 = vextract.high.u32 %v612
    %v615 = vmul.u32.u64.compose %v611, %v606
    %v616 = vextract.low.u32 %v615
    %v617 = vextract.high.u32 %v615
    %v618 = vmul.u32 %v611, %v602
    %v619 = vadd.s32 %v614, %v616
    %vm620 = vc.u32 %v614, %v616
    %v621 = vadd.s32 %v617, 1
    %v622 = vsel %vm620, %v621, %v617
    %v623 = vadd.s32 %v618, %v622
    %v624 = vadd.s32 %v623, 536870912
    %v625 = vshrl.u32 %v624, 30
    %v626 = vshll.u32 %v625, 30
    %v627 = vsub.s32 %v623, %v626
    %vm628 = vcmp.lt.s32.totalorder %v627, 0
    %v629 = vsub.s32 0, %v627
    %v630 = vsel %vm628, %v629, %v627
    %v631 = vclz %v630
    %v632 = vsub.s32 %v631, 2
    %vm633 = vcmp.gt.s32.totalorder 0, %v632
    %v634 = vsel %vm633, 0, %v632
    %v635 = vsub.s32 32, %v634
    %v636 = vshll.u32 %v627, %v634
    %v637 = vshrl.u32 %v619, %v635
    %v638 = vor.u32 %v636, %v637
    %v639 = vsub.s32 4294967266, %v634
    %v640 = vadd.s32 %v639, 127
    %v641 = vshll.u32 %v640, 23
    %v642 = vor.u32 4788187, %v641
    %v643 = vand.u32 2147483647, %v642
    %v645 = vcvt.s32.f32 %v638
    %v646 = vmul.f32 %v645, %v643
    %v647 = vxor.u32 %v646, 2147483648
    %v648 = vsel %vm565, %v647, %v646
    %v649 = vsub.s32 4, %v625
    %v650 = vsel %vm565, %v649, %v625
    %v651 = vsel %vm564, %v45, %v648
    %v652 = vsel %vm564, 0, %v650
    %v653 = vcosq.f32.pop %v651
    %v654 = vsinq.f32.pop %v651
    %vm655 = vweird.f32 %v45
    %v656 = vadd.s32 %v652, 3
    %v657 = vand.u32 %v656, 3
    %vm658 = vcmp.lt.s32.totalorder %v657, 2
    %vm659 = vcmp.eq.s32.totalorder %v657, 0
    %v660 = vxor.u32 %v654, 2147483648
    %v661 = vsel %vm659, %v653, %v660
    %vm662 = vcmp.eq.s32.totalorder %v657, 2
    %v663 = vxor.u32 %v653, 2147483648
    %v664 = vsel %vm662, %v663, %v654
    %v665 = vsel %vm658, %v661, %v664
    %v666 = vsel %vm655, nan, %v665
    %v667 = vlaneseq
    %v668 = vand.u32 %v667, 127
    %vm669 = vcmp.lt.s32.totalorder %v668, 0
    %v670 = vsub.s32 0, %v668
    %v671 = vsel %vm669, %v670, %v668
    %v672 = vshrl.u32 %v671, 1
    %v673 = vand.u32 %v671, 1
    %v674 = vsub.s32 0, %v673
    %v675 = vsel %vm669, %v674, %v673
    %vm676 = vcmp.ne.s32.totalorder %v675, 0
    %vm677 = vcmp.lt.s32.totalorder %v675, 0
    %vm678 = vmand %vm677, %vm676
    %v679 = vadd.s32 %v675, 2
    %v680 = vsel %vm678, %v679, %v675
    %vm681 = vcmp.eq.s32.totalorder %v680, 0
    %682 = vrot.lane.b32.xlu0 %v15, 127
    %v683 = vpop.permute.xlu0 %682
    %684 = vrot.lane.b32.xlu0 %v16, 127
    %v685 = vpop.permute.xlu0 %684
    %686 = vrot.lane.b32.xlu0 %v17, 127
    %v687 = vpop.permute.xlu0 %686
    %688 = vrot.lane.b32.xlu0 %v15, 1
    %v689 = vpop.permute.xlu0 %688
    %690 = vrot.lane.b32.xlu0 %v16, 1
    %v691 = vpop.permute.xlu0 %690
    %692 = vrot.lane.b32.xlu0 %v17, 1
    %v693 = vpop.permute.xlu0 %692
    %v694 = vsub.f32 0.0, %v683
    %v695 = vsub.f32 0.0, %v685
    %v696 = vsub.f32 0.0, %v687
    %v697 = vsel %vm681, %v694, %v689
    %v698 = vsel %vm681, %v695, %v691
    %v699 = vsel %vm681, %v696, %v693
    %v700 = vmul.f32 %v15, %v148
    %v701 = vmul.f32 %v16, %v251
    %v702 = vmul.f32 %v17, %v354
    %v703 = vmul.f32 %v697, %v458
    %v704 = vmul.f32 %v698, %v562
    %v705 = vmul.f32 %v699, %v666
    %v706 = vadd.f32 %v700, %v703
    %v707 = vadd.f32 %v701, %v704
    %v708 = vadd.f32 %v702, %v705
    %709 = vst [vmem:[#allocation2] sm:$0xff] %v706
    %710 = vst [vmem:[#allocation2 + $0x8] sm:$0xff] %v707
    %711 = vst [vmem:[#allocation2 + $0x10] sm:$0xff] %v708
    // Predicated region
    $region14: #{tpu_custom_call.1} parent=1 // pred_check
      _
    $region15: #{tpu_custom_call.1} parent=1 // pred_check_branch
      %713 = sbr.rel (0) target = $region17
    $region16: #{tpu_custom_call.1} parent=1 // pred_region
      %s715 = ssub.s32 384, 384
      %716 = vsyncadd [#allocation3], %s715
      %s717 = sshll.u32 [#allocation2], 4
      %s718 = int_to_ptr.vmem [resolvable:$true] %s717
      %723 = dma.vmem_to_hbm [thread:$0]  %s718, 384, %s3, [#allocation3], 128, 128, 8
    $region17: #{tpu_custom_call.1} parent=1 // pred_fallthru
      _
    // Predicated region
    $region18: #{tpu_custom_call.1} parent=1 // pred_check
      _
    $region19: #{tpu_custom_call.1} parent=1 // pred_check_branch
      %725 = sbr.rel (0) target = $region21
    $region20: #{tpu_custom_call.1} parent=1 // pred_region
      %726 = dma.done [#allocation3], 384
    $region21: #{tpu_custom_call.1} parent=1 // pred_fallthru
      _
    %727 = vsyncpa [#allocation3], 1

</llo_original>
